<compile_context>
chip_gen: v7x
topology: tpu7x:2x2x1
jax: 0.10.0
libtpu: 0.0.40
codegen_flags: <defaults>
</compile_context>

<pallas_src>
import functools

import jax
import jax.numpy as jnp
from jax.experimental import pallas as pl
from jax.experimental.pallas import tpu as pltpu


def _patch_embed_kernel(x_ref, w_ref, b_ref, o_ref):
    # One M-tile of patches projected to embed_dim on the MXU (bf16 in, f32 acc),
    # bias added on the f32 accumulator, cast to the output dtype on store.
    acc = jnp.dot(x_ref[...], w_ref[...], preferred_element_type=jnp.float32)
    o_ref[...] = (acc + b_ref[...]).astype(o_ref.dtype)


def _patch_embed_matmul(patches, w, b, *, block_rows, out_dtype):
    M, K = patches.shape
    Kw, E = w.shape
    assert Kw == K
    grid = (pl.cdiv(M, block_rows),)
    return pl.pallas_call(
        _patch_embed_kernel,
        out_shape=jax.ShapeDtypeStruct((M, E), out_dtype),
        grid_spec=pltpu.PrefetchScalarGridSpec(
            num_scalar_prefetch=0,
            grid=grid,
            in_specs=[
                # M-tile of patches (double-buffered by the auto-pipeline; the last
                # block may be ragged — Pallas masks the out-of-range stores).
                pl.BlockSpec((block_rows, K), lambda i: (i, 0)),
                # Full weight and bias: grid-invariant -> fetched once, VMEM-resident.
                pl.BlockSpec((K, E), lambda i: (0, 0)),
                pl.BlockSpec((1, E), lambda i: (0, 0)),
            ],
            out_specs=pl.BlockSpec((block_rows, E), lambda i: (i, 0)),
        ),
        compiler_params=pltpu.CompilerParams(
            dimension_semantics=("parallel",)),
    )(patches, w, b)


class PatchEmbed3D:
    """JAX/Pallas port of the PyTorch PatchEmbed3D (norm_layer=None)."""

    def __init__(self, patch_size=(2, 4, 4), in_chans=3, embed_dim=96,
                 flatten=True, key=jax.random.PRNGKey(0), dtype=jnp.float32,
                 compute_dtype=jnp.bfloat16, out_dtype=None):
        self.patch_size = patch_size
        self.in_chans = in_chans
        self.embed_dim = embed_dim
        self.flatten = flatten
        self.compute_dtype = compute_dtype
        self.out_dtype = out_dtype
        pd, ph, pw = patch_size
        kw_key, kb_key = jax.random.split(key)
        # Conv3d weight: [embed_dim, in_chans, pd, ph, pw]; PyTorch-style uniform init.
        fan_in = in_chans * pd * ph * pw
        bound = 1.0 / (fan_in ** 0.5)
        self.weight = jax.random.uniform(
            kw_key, (embed_dim, in_chans, pd, ph, pw), dtype, -bound, bound)
        self.bias = jax.random.uniform(kb_key, (embed_dim,), dtype, -bound, bound)

    def __call__(self, x, *, block_rows=None):
        # x: [B, C, D, H, W]
        B, C, D, H, W = x.shape
        pd, ph, pw = self.patch_size
        in_dtype = x.dtype
        cdt = self.compute_dtype

        # Cast to the compute dtype first so the pad / unfold intermediates are
        # written to HBM at half width (for the bf16 path).
        x = x.astype(cdt)

        # Pad trailing spatial dims up to multiples of the patch size (zeros),
        # matching the F.pad calls in the PyTorch forward.
        pad_d = (-D) % pd
        pad_h = (-H) % ph
        pad_w = (-W) % pw
        if pad_d or pad_h or pad_w:
            x = jnp.pad(x, ((0, 0), (0, 0), (0, pad_d), (0, pad_h), (0, pad_w)))
        D2, H2, W2 = D + pad_d, H + pad_h, W + pad_w
        Dp, Hp, Wp = D2 // pd, H2 // ph, W2 // pw
        K = C * pd * ph * pw
        M = B * Dp * Hp * Wp

        # Patch extraction (im2col) -- wrapper-side layout glue (see TODO above).
        # [B, C, Dp, pd, Hp, ph, Wp, pw] -> [B, Dp, Hp, Wp, C, pd, ph, pw]
        xp = x.reshape(B, C, Dp, pd, Hp, ph, Wp, pw)
        xp = xp.transpose(0, 2, 4, 6, 1, 3, 5, 7)
        patches = xp.reshape(M, K)

        # Conv3d weight [E, C, pd, ph, pw] -> [K, E]; bias stays f32 (added to the
        # f32 accumulator inside the kernel).
        w = self.weight.reshape(self.embed_dim, K).T.astype(cdt)
        b = self.bias.reshape(1, self.embed_dim).astype(jnp.float32)

        if block_rows is None:
            # Big M tiles amortise the ~0.35us/grid-step overhead; 8192 rows of
            # bf16 patches + f32 output is ~9 MiB double-buffered, inside the
            # scoped-VMEM defaults on v5e/v6e/v7x.  If M is smaller, use the full
            # extent (block == full dim, so the (8,128) rule is satisfied).
            block_rows = min(8192, M)
        out_dtype = self.out_dtype if self.out_dtype is not None else in_dtype

        out = _patch_embed_matmul(
            patches, w, b, block_rows=block_rows, out_dtype=out_dtype)  # [M, E]

        out = out.reshape(B, Dp * Hp * Wp, self.embed_dim)  # flatten(2).transpose(1,2)
        if not self.flatten:
            # un-flattened NCDHW conv output
            out = out.reshape(B, Dp, Hp, Wp, self.embed_dim).transpose(0, 4, 1, 2, 3)
        return out
        # TODO(synk): norm_layer (LayerNorm over embed_dim) not implemented; module default is None.


def _reference(x, weight, bias, patch_size):
    """Pure-JAX f32 reference: conv3d with stride == kernel, then flatten."""
    pd, ph, pw = patch_size
    B, C, D, H, W = x.shape
    x = jnp.pad(x, ((0, 0), (0, 0),
                    (0, (-D) % pd), (0, (-H) % ph), (0, (-W) % pw)))
    y = jax.lax.conv_general_dilated(
        x, weight, window_strides=(pd, ph, pw), padding="VALID",
        dimension_numbers=("NCDHW", "OIDHW", "NCDHW"))
    y = y + bias[None, :, None, None, None]
    B, E, Dp, Hp, Wp = y.shape
    return y.reshape(B, E, Dp * Hp * Wp).transpose(0, 2, 1)


if __name__ == "__main__":
    key = jax.random.PRNGKey(0)
    k_x, k_m, k_x3 = jax.random.split(key, 3)

    patch_size = (2, 4, 4)
    embed_dim = 96

    # ---- Test 1: demo shape, bf16 compute path (default) --------------------
    B, C, D, H, W = 2, 4, 4, 16, 16
    x = jax.random.normal(k_x, (B, C, D, H, W), jnp.float32)
    mod = PatchEmbed3D(patch_size=patch_size, in_chans=C, embed_dim=embed_dim,
                       key=k_m, compute_dtype=jnp.bfloat16)
    out = jax.block_until_ready(jax.jit(mod.__call__)(x))
    ref = _reference(x, mod.weight, mod.bias, patch_size)
    n_tok = (D // 2) * (H // 4) * (W // 4)
    assert out.shape == ref.shape == (B, n_tok, embed_dim), out.shape
    err = float(jnp.max(jnp.abs(out - ref)))
    assert err < 3e-2, err

    # ---- Test 2: f32 compute path matches the conv3d reference tightly ------
    mod32 = PatchEmbed3D(patch_size=patch_size, in_chans=C, embed_dim=embed_dim,
                         key=k_m, compute_dtype=jnp.float32)
    out32 = jax.block_until_ready(jax.jit(mod32.__call__)(x))
    ref32 = _reference(x, mod32.weight, mod32.bias, patch_size)
    assert jnp.allclose(out32, ref32, atol=1e-4, rtol=1e-4), \
        float(jnp.max(jnp.abs(out32 - ref32)))

    # ---- Test 3: non-divisible spatial dims (zero pad) + ragged multi-step grid
    B3, C3, D3, H3, W3 = 2, 4, 5, 18, 18      # pads to D=6, H=W=20 -> M = 150
    x3 = jax.random.normal(k_x3, (B3, C3, D3, H3, W3), jnp.float32)
    fwd3 = jax.jit(functools.partial(mod.__call__, block_rows=16))  # grid=10, ragged tail
    out3 = jax.block_until_ready(fwd3(x3))
    ref3 = _reference(x3, mod.weight, mod.bias, patch_size)
    assert out3.shape == ref3.shape == (B3, 3 * 5 * 5, embed_dim), out3.shape
    err3 = float(jnp.max(jnp.abs(out3 - ref3)))
    assert err3 < 3e-2, err3

    print("KERNEL_OK")
</pallas_src>

<mosaic_0001>
module attributes {stable_mosaic.version = 11 : i64} {
  func.func @_patch_embed_kernel(%arg0: i32, %arg1: memref<64x128xbf16, #tpu.memory_space<vmem>>, %arg2: memref<128x96xbf16, #tpu.memory_space<vmem>>, %arg3: memref<1x96xf32, #tpu.memory_space<vmem>>, %arg4: memref<64x96xf32, #tpu.memory_space<vmem>>) attributes {dimension_semantics = [#tpu.dimension_semantics<parallel>], iteration_bounds = array<i64: 1>, scalar_prefetch = 0 : i64, scratch_operands = 0 : i64, tpu.core_type = #tpu.core_type<tc>, window_params = [{transform_indices = @transform_0, window_bounds = array<i64: 64, 128>}, {pipeline_mode = #tpu.pipeline_mode<synchronous>, transform_indices = @transform_1, window_bounds = array<i64: 128, 96>}, {pipeline_mode = #tpu.pipeline_mode<synchronous>, transform_indices = @transform_2, window_bounds = array<i64: 1, 96>}, {transform_indices = @transform_3, window_bounds = array<i64: 64, 96>}]} {
    %c0 = arith.constant 0 : index
    %c0_0 = arith.constant 0 : index
    %0 = vector.load %arg1[%c0, %c0_0] : memref<64x128xbf16, #tpu.memory_space<vmem>>, vector<64x128xbf16>
    %c0_1 = arith.constant 0 : index
    %c0_2 = arith.constant 0 : index
    %1 = vector.load %arg2[%c0_1, %c0_2] : memref<128x96xbf16, #tpu.memory_space<vmem>>, vector<128x96xbf16>
    %cst = arith.constant dense<0.000000e+00> : vector<64x96xf32>
    %2 = tpu.matmul %0, %1, %cst {dimension_numbers = #tpu.dot_dimension_numbers<[1], [0], [0], [1], [0, 0, 1, 1], [], []>} : vector<64x128xbf16>, vector<128x96xbf16>, vector<64x96xf32> -> vector<64x96xf32>
    %c0_3 = arith.constant 0 : index
    %c0_4 = arith.constant 0 : index
    %3 = vector.load %arg3[%c0_3, %c0_4] : memref<1x96xf32, #tpu.memory_space<vmem>>, vector<1x96xf32>
    %4 = vector.broadcast %3 : vector<1x96xf32> to vector<64x96xf32>
    %5 = arith.addf %2, %4 : vector<64x96xf32>
    %c0_5 = arith.constant 0 : index
    %c0_6 = arith.constant 0 : index
    %6 = vector.load %arg4[%c0_5, %c0_6] : memref<64x96xf32, #tpu.memory_space<vmem>>, vector<64x96xf32>
    tpu.vector_store %arg4[%c0_5, %c0_6], %5 {strides = array<i32>} : memref<64x96xf32, #tpu.memory_space<vmem>>, vector<64x96xf32>,
    return
  }
  func.func @transform_0(%arg0: i32) -> (i32, i32) {
    %c0_i32 = arith.constant 0 : i32
    %c0_i32_0 = arith.constant 0 : i32
    return %arg0, %c0_i32 : i32, i32
  }
  func.func @transform_1(%arg0: i32) -> (i32, i32) {
    %c0_i32 = arith.constant 0 : i32
    %c0_i32_0 = arith.constant 0 : i32
    %c0_i32_1 = arith.constant 0 : i32
    return %c0_i32, %c0_i32_0 : i32, i32
  }
  func.func @transform_2(%arg0: i32) -> (i32, i32) {
    %c0_i32 = arith.constant 0 : i32
    %c0_i32_0 = arith.constant 0 : i32
    %c0_i32_1 = arith.constant 0 : i32
    return %c0_i32, %c0_i32_0 : i32, i32
  }
  func.func @transform_3(%arg0: i32) -> (i32, i32) {
    %c0_i32 = arith.constant 0 : i32
    %c0_i32_0 = arith.constant 0 : i32
    return %arg0, %c0_i32 : i32, i32
  }
}

</mosaic_0001>

<llo_original>
// kernel: a_call__.1
$region0: #{a_call__.1}
  #allocation0 [shape = 'u32[]', space=smem, size = 0x4, offset = 0x4, fixed_abs, tag = 'smem constant byte address 0x4 - core index']
  #allocation1 [shape = 'u32[144,128]{1,0:T(1,128)}', space=vmem, size = 0x12000, scoped, tag = 'internal scratch']
  %s0 = inlined_call_operand.vmem [shape: bf16[64,128], index: 0, kind: input, shape index: {}]
  %s1 = inlined_call_operand.vmem [shape: bf16[128,96], index: 1, kind: input, shape index: {}]
  %s2 = inlined_call_operand.vmem [shape: f32[1,96], index: 2, kind: input, shape index: {}]
  %s3 = inlined_call_operand.hbm [shape: f32[64,96], index: 3, kind: output, shape index: {}]
  %s4 = sld [smem:[#allocation0]]
  $region22: #{a_call__.1} parent=0
    _
  %s6 = ssub.s32 1, %s4
  %s7 = scalar_select 0, %s6, %s4
  $region1: #{a_call__.1} parent=0
    #allocation2 [shape = 'u8[32768]{0}', space=vmem, size = 0x8000, scoped, tag = 'output window, operand 0, single buffered']
    #allocation3 [shape = 's32[1]{0}', space=sflag, size = 0x4, scoped, tag = 'scoped memory for a_call__.1']
    %8 = vsyncpa [#allocation3], 0
    // Predicated region
    $region2: #{a_call__.1} parent=1 // pred_check
      _
    $region3: #{a_call__.1} parent=1 // pred_check_branch
      %10 = sbr.rel (0) target = $region5
    $region4: #{a_call__.1} parent=1 // pred_region
      _
    $region5: #{a_call__.1} parent=1 // pred_fallthru
      _
    // Predicated region
    $region6: #{a_call__.1} parent=1 // pred_check
      _
    $region7: #{a_call__.1} parent=1 // pred_check_branch
      %12 = sbr.rel (0) target = $region9
    $region8: #{a_call__.1} parent=1 // pred_region
      _
    $region9: #{a_call__.1} parent=1 // pred_fallthru
      _
    // Predicated region
    $region10: #{a_call__.1} parent=1 // pred_check
      _
    $region11: #{a_call__.1} parent=1 // pred_check_branch
      %14 = sbr.rel (0) target = $region13
    $region12: #{a_call__.1} parent=1 // pred_region
      _
    $region13: #{a_call__.1} parent=1 // pred_fallthru
      _
    %v16 = vld [vmem:[%s0] sm:$0xf]
    %v17 = vld [vmem:[%s0 + $0x4] sm:$0xf]
    %v18 = vld [vmem:[%s0 + $0x8] sm:$0xf]
    %v19 = vld [vmem:[%s0 + $0xc] sm:$0xf]
    %v20 = vld [vmem:[%s0 + $0x10] sm:$0xf]
    %v21 = vld [vmem:[%s0 + $0x14] sm:$0xf]
    %v22 = vld [vmem:[%s0 + $0x18] sm:$0xf]
    %v23 = vld [vmem:[%s0 + $0x1c] sm:$0xf]
    %v24 = vld [vmem:[%s1] sm:$0xf]
    %v25 = vld [vmem:[%s1 + $0x4] sm:$0xf]
    %v26 = vld [vmem:[%s1 + $0x8] sm:$0xf]
    %v27 = vld [vmem:[%s1 + $0xc] sm:$0xf]
    %v28 = vld [vmem:[%s1 + $0x10] sm:$0xf]
    %v29 = vld [vmem:[%s1 + $0x14] sm:$0xf]
    %v30 = vld [vmem:[%s1 + $0x18] sm:$0xf]
    %v31 = vld [vmem:[%s1 + $0x1c] sm:$0xf]
    %v32 = vld [vmem:[%s1 + $0x20] sm:$0xf]
    %v33 = vld [vmem:[%s1 + $0x24] sm:$0xf]
    %v34 = vld [vmem:[%s1 + $0x28] sm:$0xf]
    %v35 = vld [vmem:[%s1 + $0x2c] sm:$0xf]
    %v36 = vld [vmem:[%s1 + $0x30] sm:$0xf]
    %v37 = vld [vmem:[%s1 + $0x34] sm:$0xf]
    %v38 = vld [vmem:[%s1 + $0x38] sm:$0xf]
    %v39 = vld [vmem:[%s1 + $0x3c] sm:$0xf]
    %v40 = vld [vmem:[%s2] sm:$0x1]
    %v42 = vlaneseq
    %v43 = vshrl.u32 %v42, 7
    %v44 = vsub.s32 0, %v43
    %v45 = vrot.slane %v40, %v44
    %v55 = vunpack.c.l.b16 %v16
    %v56 = vunpack.c.l.b16 %v17
    %v57 = vunpack.c.l.b16 %v18
    %v58 = vunpack.c.l.b16 %v19
    %v59 = vunpack.c.l.b16 %v20
    %v60 = vunpack.c.l.b16 %v21
    %v61 = vunpack.c.l.b16 %v22
    %v62 = vunpack.c.l.b16 %v23
    %v63 = vpack.c.b16 %v56, %v55
    %v64 = vpack.c.b16 %v58, %v57
    %v65 = vpack.c.b16 %v60, %v59
    %v66 = vpack.c.b16 %v62, %v61
    %v87 = vunpack.c.l.b16 %v24
    %v88 = vunpack.c.l.b16 %v25
    %v89 = vunpack.c.l.b16 %v26
    %v90 = vunpack.c.l.b16 %v27
    %v91 = vunpack.c.l.b16 %v28
    %v92 = vunpack.c.l.b16 %v29
    %v93 = vunpack.c.l.b16 %v30
    %v94 = vunpack.c.l.b16 %v31
    %v95 = vunpack.c.l.b16 %v32
    %v96 = vunpack.c.l.b16 %v33
    %v97 = vunpack.c.l.b16 %v34
    %v98 = vunpack.c.l.b16 %v35
    %v99 = vunpack.c.l.b16 %v36
    %v100 = vunpack.c.l.b16 %v37
    %v101 = vunpack.c.l.b16 %v38
    %v102 = vunpack.c.l.b16 %v39
    %v103 = vpack.c.b16 %v88, %v87
    %v104 = vpack.c.b16 %v90, %v89
    %v105 = vpack.c.b16 %v92, %v91
    %v106 = vpack.c.b16 %v94, %v93
    %v107 = vpack.c.b16 %v96, %v95
    %v108 = vpack.c.b16 %v98, %v97
    %v109 = vpack.c.b16 %v100, %v99
    %v110 = vpack.c.b16 %v102, %v101
    %119 = vmatprep.subr.bf16.mxu0 0
    %120 = vmatpush1.bf16.msra.mxu0 %v103
    %121 = vmatprep.subr.bf16.mxu0 0
    %122 = vmatpush1.bf16.msra.mxu0 %v104
    %123 = vmatprep.subr.bf16.mxu0 0
    %124 = vmatpush1.bf16.msra.mxu0 %v105
    %125 = vmatprep.subr.bf16.mxu0 0
    %126 = vmatpush1.bf16.msra.mxu0 %v106
    %127 = vmatprep.subr.bf16.mxu0 0
    %128 = vmatpush1.bf16.msra.mxu0 %v107
    %129 = vmatprep.subr.bf16.mxu0 0
    %130 = vmatpush1.bf16.msra.mxu0 %v108
    %131 = vmatprep.subr.bf16.mxu0 0
    %132 = vmatpush1.bf16.msra.mxu0 %v109
    %133 = vmatprep.subr.bf16.mxu0 0
    %134 = vmatpush1.bf16.msra.mxu0 %v110
    %135 = vmatprep.subr.bf16.mxu0 0
    %136 = vmatpush1.bf16.msra.mxu0 0
    %137 = vmatprep.subr.bf16.mxu0 0
    %138 = vmatpush1.bf16.msra.mxu0 0
    %139 = vmatprep.subr.bf16.mxu0 0
    %140 = vmatpush1.bf16.msra.mxu0 0
    %141 = vmatprep.subr.bf16.mxu0 0
    %142 = vmatpush1.bf16.msra.mxu0 0
    %143 = vmatprep.subr.bf16.mxu0 0
    %144 = vmatpush1.bf16.msra.mxu0 0
    %145 = vmatprep.subr.bf16.mxu0 0
    %146 = vmatpush1.bf16.msra.mxu0 0
    %147 = vmatprep.subr.bf16.mxu0 0
    %148 = vmatpush1.bf16.msra.mxu0 0
    %149 = vmatprep.subr.bf16.mxu0 0
    %150 = vmatpush1.bf16.msra.mxu0 0
    %151 = vmatprep.mubr.bf16.mxu0 0
    %152 = vmatmul.mubr.bf16.gmra.mrb[0].mxu0 %v63
    %v153 = vpop.f32.mrb[0].mxu0
    %v154 = vadd.f32 %v45, %v153
    %v155 = vpop.f32.mrb[0].mxu0
    %v156 = vpop.f32.mrb[0].mxu0
    %v157 = vadd.f32 %v45, %v156
    %v158 = vpop.f32.mrb[0].mxu0
    %159 = vmatprep.mubr.bf16.mxu0 0
    %160 = vmatmul.mubr.bf16.gmra.mrb[0].mxu0 %v64
    %v161 = vpop.f32.mrb[0].mxu0
    %v162 = vadd.f32 %v45, %v161
    %v163 = vpop.f32.mrb[0].mxu0
    %v164 = vpop.f32.mrb[0].mxu0
    %v165 = vadd.f32 %v45, %v164
    %v166 = vpop.f32.mrb[0].mxu0
    %167 = vmatprep.mubr.bf16.mxu0 0
    %168 = vmatmul.mubr.bf16.gmra.mrb[0].mxu0 %v65
    %v169 = vpop.f32.mrb[0].mxu0
    %v170 = vadd.f32 %v45, %v169
    %v171 = vpop.f32.mrb[0].mxu0
    %v172 = vpop.f32.mrb[0].mxu0
    %v173 = vadd.f32 %v45, %v172
    %v174 = vpop.f32.mrb[0].mxu0
    %175 = vmatprep.mubr.bf16.mxu0 0
    %176 = vmatmul.mubr.bf16.gmra.mrb[0].mxu0 %v66
    %v177 = vpop.f32.mrb[0].mxu0
    %v178 = vadd.f32 %v45, %v177
    %v179 = vpop.f32.mrb[0].mxu0
    %v180 = vpop.f32.mrb[0].mxu0
    %v181 = vadd.f32 %v45, %v180
    %v182 = vpop.f32.mrb[0].mxu0
    %183 = vdwg.mxu0
    %vm184 = vcmask 785408
    %185 = vst.msk [vmem:[#allocation2] sm:$0xff] %vm184, %v154
    %186 = vst.msk [vmem:[#allocation2 + $0x8] sm:$0xff] %vm184, %v157
    %187 = vst.msk [vmem:[#allocation2 + $0x10] sm:$0xff] %vm184, %v162
    %188 = vst.msk [vmem:[#allocation2 + $0x18] sm:$0xff] %vm184, %v165
    %189 = vst.msk [vmem:[#allocation2 + $0x20] sm:$0xff] %vm184, %v170
    %190 = vst.msk [vmem:[#allocation2 + $0x28] sm:$0xff] %vm184, %v173
    %191 = vst.msk [vmem:[#allocation2 + $0x30] sm:$0xff] %vm184, %v178
    %192 = vst.msk [vmem:[#allocation2 + $0x38] sm:$0xff] %vm184, %v181
    // Predicated region
    $region14: #{a_call__.1} parent=1 // pred_check
      _
    $region15: #{a_call__.1} parent=1 // pred_check_branch
      %194 = sbr.rel (0) target = $region17
    $region16: #{a_call__.1} parent=1 // pred_region
      %s196 = ssub.s32 1024, 1024
      %197 = vsyncadd [#allocation3], %s196
      %s198 = sshll.u32 [#allocation2], 4
      %s199 = int_to_ptr.vmem [resolvable:$true] %s198
      %204 = dma.vmem_to_hbm [thread:$0]  %s199, 1024, %s3, [#allocation3], 128, 128, 8
    $region17: #{a_call__.1} parent=1 // pred_fallthru
      _
    // Predicated region
    $region18: #{a_call__.1} parent=1 // pred_check
      _
    $region19: #{a_call__.1} parent=1 // pred_check_branch
      %206 = sbr.rel (0) target = $region21
    $region20: #{a_call__.1} parent=1 // pred_region
      %207 = dma.done [#allocation3], 1024
    $region21: #{a_call__.1} parent=1 // pred_fallthru
      _
    %208 = vsyncpa [#allocation3], 1

</llo_original>
